<compile_context>
chip_gen: v5e
topology: v5e:2x2
jax: 0.10.0
libtpu: 0.0.40
codegen_flags: <defaults>
</compile_context>

<pallas_src>
import functools
import math

import jax
import jax.numpy as jnp
from jax.experimental import pallas as pl
from jax.experimental.pallas import tpu as pltpu


def _attn_kernel(x_ref, v_ref, o_ref, *, scale):
    # x_ref: (TB, S, D), v_ref: (1, D), o_ref: (TB, D)
    x = x_ref[...].astype(jnp.float32)
    v = v_ref[...].astype(jnp.float32)                                  # (1, D)
    logits = jnp.sum(x * v[None, :, :], axis=-1, keepdims=True) * scale  # (TB, S, 1)
    mx = jnp.max(logits, axis=1, keepdims=True)                         # (TB, 1, 1)
    p = jnp.exp(logits - mx)                                            # (TB, S, 1)
    inv = pl.reciprocal(jnp.sum(p, axis=1, keepdims=True), approx=False)
    w = p * inv                                                         # (TB, S, 1)
    o_ref[...] = jnp.sum(w * x, axis=1).astype(o_ref.dtype)             # (TB, D)


def _attn_mask_kernel(x_ref, v_ref, m_ref, o_ref, *, scale):
    # x_ref: (TB, S, D), v_ref: (1, D), m_ref: (TB, S, 1), o_ref: (TB, D)
    x = x_ref[...].astype(jnp.float32)
    v = v_ref[...].astype(jnp.float32)                                  # (1, D)
    msk = m_ref[...].astype(jnp.float32)                                # (TB, S, 1)
    logits = jnp.sum(x * v[None, :, :], axis=-1, keepdims=True) * scale
    logits = logits - 1000.0 * msk                                      # (TB, S, 1)
    mx = jnp.max(logits, axis=1, keepdims=True)
    p = jnp.exp(logits - mx)
    inv = pl.reciprocal(jnp.sum(p, axis=1, keepdims=True), approx=False)
    w = p * inv
    o_ref[...] = jnp.sum(w * x, axis=1).astype(o_ref.dtype)


def _choose_tb(B, S, D, itemsize):
    """Pick rows-per-block: TB == B, or a multiple of 8 dividing B, such that
    the double-buffered working set stays well under the 32 MiB default scoped
    VMEM limit (and therefore also fits v7x's 64 MiB physical VMEM)."""
    budget = 16 * 1024 * 1024
    row_bytes = (S * D + S + D) * itemsize
    max_tb = max(1, budget // (2 * row_bytes))  # x2 for double buffering
    if B <= max_tb:
        return B
    tb = (min(max_tb, B) // 8) * 8
    while tb >= 8:
        if B % tb == 0:
            return tb
        tb -= 8
    # TODO(synk): for huge S*D that cannot fit a single (TB, S, D) block, tile
    # the S axis with an online-softmax VMEM accumulator.
    return B


def vector_attention_aggregator(x, vector, mask=None):
    """Pallas implementation of VectorAttentionAggregator.forward (agg_dim=1).

    x:      (B, S, D)
    vector: (D,)            -- the learned attention vector parameter
    mask:   None, (B, S) or (B, S, 1); value 1 suppresses a position
            (logit -= 1000 * mask), matching the PyTorch module.
    returns (B, D)
    """
    B, S, D = x.shape
    assert vector.shape == (D,)
    scale = 1.0 / math.sqrt(D)

    TB = _choose_tb(B, S, D, jnp.dtype(x.dtype).itemsize)
    grid = (B // TB,)

    vec2d = vector.reshape(1, D).astype(x.dtype)
    out_shape = jax.ShapeDtypeStruct((B, D), x.dtype)

    x_spec = pl.BlockSpec((TB, S, D), lambda b: (b, 0, 0))
    v_spec = pl.BlockSpec((1, D), lambda b: (0, 0))
    o_spec = pl.BlockSpec((TB, D), lambda b: (b, 0))
    cparams = pltpu.CompilerParams(dimension_semantics=("parallel",))

    if mask is None:
        kern = functools.partial(_attn_kernel, scale=scale)
        return pl.pallas_call(
            kern,
            out_shape=out_shape,
            grid=grid,
            in_specs=[x_spec, v_spec],
            out_specs=o_spec,
            compiler_params=cparams,
        )(x, vec2d)

    # The mask must broadcast over the feature dim ((B, S) or (B, S, 1)),
    # matching dot_products' (B, S, 1) shape in the PyTorch module.
    # TODO(synk): a genuinely (B, S, D) mask would give a per-feature softmax;
    # that variant is not supported by this kernel.
    if mask.ndim == 3:
        assert mask.shape == (B, S, 1)
        mask3d = mask
    else:
        assert mask.shape == (B, S)
        mask3d = mask.reshape(B, S, 1)
    mask3d = mask3d.astype(x.dtype)

    m_spec = pl.BlockSpec((TB, S, 1), lambda b: (b, 0, 0))
    kern = functools.partial(_attn_mask_kernel, scale=scale)
    return pl.pallas_call(
        kern,
        out_shape=out_shape,
        grid=grid,
        in_specs=[x_spec, v_spec, m_spec],
        out_specs=o_spec,
        compiler_params=cparams,
    )(x, vec2d, mask3d)


if __name__ == "__main__":
    key = jax.random.PRNGKey(0)
    kx, kv, km = jax.random.split(key, 3)

    B, S, D = 2, 8, 32
    x = jax.random.normal(kx, (B, S, D), dtype=jnp.float32)
    vector = jax.random.normal(kv, (D,), dtype=jnp.float32)
    # binary mask over the aggregated axis (1 = suppress), broadcast over D
    mask = (jax.random.uniform(km, (B, S, 1)) > 0.5).astype(jnp.float32)

    def ref(x, vector, mask=None):
        dp = jnp.einsum("bsd,d->bs", x, vector) / math.sqrt(D)
        dp = dp[..., None]                            # (B, S, 1)
        if mask is not None:
            dp = dp - 1000.0 * mask
        w = jax.nn.softmax(dp, axis=-2)               # softmax over S
        return jnp.sum(w * x, axis=-2)                # (B, D)

    # path 1: no mask
    out = jax.block_until_ready(vector_attention_aggregator(x, vector))
    assert out.shape == (B, D)
    assert jnp.allclose(out, ref(x, vector), atol=1e-5, rtol=1e-4)

    # path 2: masked
    out_m = jax.block_until_ready(vector_attention_aggregator(x, vector, mask))
    assert out_m.shape == (B, D)
    assert jnp.allclose(out_m, ref(x, vector, mask), atol=1e-5, rtol=1e-4)

    print("KERNEL_OK")
</pallas_src>

<mosaic_0001>
module attributes {stable_mosaic.version = 11 : i64} {
  func.func @_attn_kernel(%arg0: i32, %arg1: memref<2x8x32xf32, #tpu.memory_space<vmem>>, %arg2: memref<1x32xf32, #tpu.memory_space<vmem>>, %arg3: memref<2x32xf32, #tpu.memory_space<vmem>>) attributes {dimension_semantics = [#tpu.dimension_semantics<parallel>], iteration_bounds = array<i64: 1>, scalar_prefetch = 0 : i64, scratch_operands = 0 : i64, tpu.core_type = #tpu.core_type<tc>, window_params = [{transform_indices = @transform_0, window_bounds = array<i64: 2, 8, 32>}, {pipeline_mode = #tpu.pipeline_mode<synchronous>, transform_indices = @transform_1, window_bounds = array<i64: 1, 32>}, {transform_indices = @transform_2, window_bounds = array<i64: 2, 32>}]} {
    %c0 = arith.constant 0 : index
    %c0_0 = arith.constant 0 : index
    %c0_1 = arith.constant 0 : index
    %0 = vector.load %arg1[%c0, %c0_0, %c0_1] : memref<2x8x32xf32, #tpu.memory_space<vmem>>, vector<2x8x32xf32>
    %c0_2 = arith.constant 0 : index
    %c0_3 = arith.constant 0 : index
    %1 = vector.load %arg2[%c0_2, %c0_3] : memref<1x32xf32, #tpu.memory_space<vmem>>, vector<1x32xf32>
    %2 = vector.shape_cast %1 : vector<1x32xf32> to vector<1x1x32xf32>
    %3 = vector.broadcast %2 : vector<1x1x32xf32> to vector<2x8x32xf32>
    %4 = arith.mulf %0, %3 : vector<2x8x32xf32>
    %cst = arith.constant dense<0.000000e+00> : vector<2x8xf32>
    %5 = vector.multi_reduction <add>, %4, %cst [2] : vector<2x8x32xf32> to vector<2x8xf32>
    %6 = vector.shape_cast %5 : vector<2x8xf32> to vector<2x8x1xf32>
    %cst_4 = arith.constant 0.176776692 : f32
    %7 = vector.broadcast %cst_4 : f32 to vector<2x8x1xf32>
    %8 = arith.mulf %6, %7 : vector<2x8x1xf32>
    %cst_5 = arith.constant dense<0xFF800000> : vector<2x1xf32>
    %9 = vector.multi_reduction <maximumf>, %8, %cst_5 [1] : vector<2x8x1xf32> to vector<2x1xf32>
    %10 = vector.shape_cast %9 : vector<2x1xf32> to vector<2x1x1xf32>
    %11 = vector.broadcast %10 : vector<2x1x1xf32> to vector<2x8x1xf32>
    %12 = arith.subf %8, %11 : vector<2x8x1xf32>
    %13 = math.exp %12 : vector<2x8x1xf32>
    %cst_6 = arith.constant dense<0.000000e+00> : vector<2x1xf32>
    %14 = vector.multi_reduction <add>, %13, %cst_6 [1] : vector<2x8x1xf32> to vector<2x1xf32>
    %15 = vector.shape_cast %14 : vector<2x1xf32> to vector<2x1x1xf32>
    %16 = tpu.reciprocal %15 : vector<2x1x1xf32> -> vector<2x1x1xf32>
    %17 = vector.broadcast %16 : vector<2x1x1xf32> to vector<2x8x1xf32>
    %18 = arith.mulf %13, %17 : vector<2x8x1xf32>
    %19 = vector.broadcast %18 : vector<2x8x1xf32> to vector<2x8x32xf32>
    %20 = arith.mulf %19, %0 : vector<2x8x32xf32>
    %cst_7 = arith.constant dense<0.000000e+00> : vector<2x32xf32>
    %21 = vector.multi_reduction <add>, %20, %cst_7 [1] : vector<2x8x32xf32> to vector<2x32xf32>
    %c0_8 = arith.constant 0 : index
    %c0_9 = arith.constant 0 : index
    %22 = vector.load %arg3[%c0_8, %c0_9] : memref<2x32xf32, #tpu.memory_space<vmem>>, vector<2x32xf32>
    tpu.vector_store %arg3[%c0_8, %c0_9], %21 {strides = array<i32>} : memref<2x32xf32, #tpu.memory_space<vmem>>, vector<2x32xf32>,
    return
  }
  func.func @transform_0(%arg0: i32) -> (i32, i32, i32) {
    %c0_i32 = arith.constant 0 : i32
    %c0_i32_0 = arith.constant 0 : i32
    %c0_i32_1 = arith.constant 0 : i32
    return %arg0, %c0_i32, %c0_i32_0 : i32, i32, i32
  }
  func.func @transform_1(%arg0: i32) -> (i32, i32) {
    %c0_i32 = arith.constant 0 : i32
    %c0_i32_0 = arith.constant 0 : i32
    %c0_i32_1 = arith.constant 0 : i32
    return %c0_i32, %c0_i32_0 : i32, i32
  }
  func.func @transform_2(%arg0: i32) -> (i32, i32) {
    %c0_i32 = arith.constant 0 : i32
    %c0_i32_0 = arith.constant 0 : i32
    return %arg0, %c0_i32 : i32, i32
  }
}

</mosaic_0001>

<llo_original>
// kernel: tpu_custom_call.1
$region0: #{tpu_custom_call.1}
  #allocation0 [shape = 'u32[]', space=smem, size = 0x4, offset = 0x4, fixed_abs, tag = 'smem constant byte address 0x4 - core index']
  #allocation1 [shape = 'u32[72,128]{1,0:T(1,128)}', space=vmem, size = 0x9000, scoped, tag = 'internal scratch']
  %s0 = inlined_call_operand.hbm [shape: f32[2,8,32], index: 0, kind: input, shape index: {}]
  %s1 = inlined_call_operand.hbm [shape: f32[1,32], index: 1, kind: input, shape index: {}]
  %s2 = inlined_call_operand.hbm [shape: f32[2,32], index: 2, kind: output, shape index: {}]
  %s3 = sld [smem:[#allocation0]]
  $region26: #{tpu_custom_call.1} parent=0
    _
  %s5 = ssub.s32 1, %s3
  %s6 = scalar_select 0, %s5, %s3
  $region1: #{tpu_custom_call.1} parent=0
    #allocation2 [shape = 'u8[8192]{0}', space=vmem, size = 0x2000, scoped, tag = 'input window, operand 0, single buffered']
    #allocation3 [shape = 's32[1]{0}', space=sflag, size = 0x4, scoped, tag = 'scoped memory for tpu_custom_call.1']
    #allocation4 [shape = 's32[1]{0}', space=sflag, size = 0x4, scoped, tag = 'scoped memory for tpu_custom_call.1']
    #allocation5 [shape = 'u8[512]{0}', space=vmem, size = 0x400, scoped, tag = 'input window, operand 1, single buffered']
    #allocation6 [shape = 's32[1]{0}', space=sflag, size = 0x4, scoped, tag = 'scoped memory for tpu_custom_call.1']
    #allocation7 [shape = 'u8[1024]{0}', space=vmem, size = 0x400, scoped, tag = 'output window, operand 0, single buffered']
    %7 = vsyncpa [#allocation3], 0
    %8 = vsyncpa [#allocation6], 0
    %9 = vsyncpa [#allocation4], 0
    // Predicated region
    $region2: #{tpu_custom_call.1} parent=1 // pred_check
      _
    $region3: #{tpu_custom_call.1} parent=1 // pred_check_branch
      %11 = sbr.rel (0) target = $region5
    $region4: #{tpu_custom_call.1} parent=1 // pred_region
      %13 = vsyncadd [#allocation3], 0
      %s14 = sshll.u32 %s0, 4
      %s15 = int_to_ptr.hbm [resolvable:$true] %s14
      %s16 = sshll.u32 [#allocation2], 4
      %s17 = int_to_ptr.vmem [resolvable:$true] %s16
      %22 = dma.hbm_to_vmem [thread:$0]  %s15, 256, %s17, [#allocation3], 128, 128, 8
    $region5: #{tpu_custom_call.1} parent=1 // pred_fallthru
      _
    // Predicated region
    $region6: #{tpu_custom_call.1} parent=1 // pred_check
      _
    $region7: #{tpu_custom_call.1} parent=1 // pred_check_branch
      %24 = sbr.rel (0) target = $region9
    $region8: #{tpu_custom_call.1} parent=1 // pred_region
      %26 = vsyncadd [#allocation6], 0
      %s28 = sshll.u32 %s1, 4
      %s29 = int_to_ptr.hbm [resolvable:$true] %s28
      %s30 = sshll.u32 [#allocation5], 4
      %s31 = int_to_ptr.vmem [resolvable:$true] %s30
      %33 = dma.hbm_to_vmem [thread:$0]  %s29, 16, %s31, [#allocation6]
    $region9: #{tpu_custom_call.1} parent=1 // pred_fallthru
      _
    // Predicated region
    $region10: #{tpu_custom_call.1} parent=1 // pred_check
      _
    $region11: #{tpu_custom_call.1} parent=1 // pred_check_branch
      %35 = sbr.rel (0) target = $region13
    $region12: #{tpu_custom_call.1} parent=1 // pred_region
      %37 = dma.done [#allocation3], 256
    $region13: #{tpu_custom_call.1} parent=1 // pred_fallthru
      _
    // Predicated region
    $region14: #{tpu_custom_call.1} parent=1 // pred_check
      _
    $region15: #{tpu_custom_call.1} parent=1 // pred_check_branch
      %39 = sbr.rel (0) target = $region17
    $region16: #{tpu_custom_call.1} parent=1 // pred_region
      %41 = dma.done [#allocation6], 16
    $region17: #{tpu_custom_call.1} parent=1 // pred_fallthru
      _
    %v42 = vld [vmem:[#allocation2] sm:$0xff]
    %v43 = vld [vmem:[#allocation2 + $0x8] sm:$0xff]
    %v44 = vld [vmem:[#allocation5] sm:$0x1]
    %v46 = vperm.slane %v44, 0
    %v48 = vmul.f32 %v42, %v46
    %v49 = vmul.f32 %v43, %v46
    %vm50 = vcmask 261120
    %v51 = vsel %vm50, %v48, 0.0
    %52 = vadd.xlane.f32.xlu0 %v51
    %v53 = vpop.xlane.xlu0 %52
    %v54 = vsel %vm50, %v49, 0.0
    %55 = vadd.xlane.f32.xlu0 %v54
    %v56 = vpop.xlane.xlu0 %55
    %v57 = vmul.f32 %v53, 0.17677669
    %v58 = vmul.f32 %v56, 0.17677669
    %v59 = vrot.slane %v57, 4
    %v60 = vmax.f32 %v57, %v59
    %v61 = vrot.slane %v60, 2
    %v62 = vmax.f32 %v60, %v61
    %v63 = vrot.slane %v62, 1
    %v64 = vmax.f32 %v62, %v63
    %v65 = vrot.slane %v58, 4
    %v66 = vmax.f32 %v58, %v65
    %v67 = vrot.slane %v66, 2
    %v68 = vmax.f32 %v66, %v67
    %v69 = vrot.slane %v68, 1
    %v70 = vmax.f32 %v68, %v69
    %v71 = vsub.f32 %v57, %v64
    %v72 = vsub.f32 %v58, %v70
    %v73 = vmul.f32 %v71, 1.442695
    %v74 = vpow.pop %v73
    %v75 = vmul.f32 %v72, 1.442695
    %v76 = vpow.pop %v75
    %v77 = vrot.slane %v74, 4
    %v78 = vadd.f32 %v74, %v77
    %v79 = vrot.slane %v78, 2
    %v80 = vadd.f32 %v78, %v79
    %v81 = vrot.slane %v80, 1
    %v82 = vadd.f32 %v80, %v81
    %v83 = vrot.slane %v76, 4
    %v84 = vadd.f32 %v76, %v83
    %v85 = vrot.slane %v84, 2
    %v86 = vadd.f32 %v84, %v85
    %v87 = vrot.slane %v86, 1
    %v88 = vadd.f32 %v86, %v87
    %v89 = vrcp.pop %v82
    %v90 = vmul.f32 %v82, %v89
    %v91 = vsub.f32 1.0, %v90
    %v92 = vmul.f32 %v89, %v91
    %v93 = vadd.f32 %v89, %v92
    %vm94 = vweird.f32 %v82
    %vm95 = vweird.f32 %v89
    %vm96 = vmor %vm94, %vm95
    %v97 = vsel %vm96, %v89, %v93
    %v98 = vand.u32 2147483647, %v82
    %vm99 = vcmp.eq.f32.partialorder %v98, 8.507059e+37
    %v100 = vand.u32 %v82, 2147483648
    %v101 = vor.u32 1.1754944e-38, %v100
    %v102 = vsel %vm99, %v101, %v97
    %v103 = vrcp.pop %v88
    %v104 = vmul.f32 %v88, %v103
    %v105 = vsub.f32 1.0, %v104
    %v106 = vmul.f32 %v103, %v105
    %v107 = vadd.f32 %v103, %v106
    %vm108 = vweird.f32 %v88
    %vm109 = vweird.f32 %v103
    %vm110 = vmor %vm108, %vm109
    %v111 = vsel %vm110, %v103, %v107
    %v112 = vand.u32 2147483647, %v88
    %vm113 = vcmp.eq.f32.partialorder %v112, 8.507059e+37
    %v114 = vand.u32 %v88, 2147483648
    %v115 = vor.u32 1.1754944e-38, %v114
    %v116 = vsel %vm113, %v115, %v111
    %v117 = vmul.f32 %v74, %v102
    %v118 = vmul.f32 %v76, %v116
    %v119 = vmul.f32 %v117, %v42
    %v120 = vmul.f32 %v118, %v43
    %v121 = vsel %vm50, %v119, 0.0
    %v122 = vrot.slane %v121, 4
    %v123 = vadd.f32 %v121, %v122
    %v124 = vrot.slane %v123, 2
    %v125 = vadd.f32 %v123, %v124
    %v126 = vrot.slane %v125, 1
    %v127 = vadd.f32 %v125, %v126
    %v128 = vsel %vm50, %v120, 0.0
    %v129 = vrot.slane %v128, 4
    %v130 = vadd.f32 %v128, %v129
    %v131 = vrot.slane %v130, 2
    %v132 = vadd.f32 %v130, %v131
    %v133 = vrot.slane %v132, 1
    %v134 = vadd.f32 %v132, %v133
    %vm137 = vcmask 1041409
    %v138 = vsel %vm137, %v134, %v127
    %vm140 = vcmask 254976
    %141 = vst.msk [vmem:[#allocation7] sm:$0x3] %vm140, %v138
    // Predicated region
    $region18: #{tpu_custom_call.1} parent=1 // pred_check
      _
    $region19: #{tpu_custom_call.1} parent=1 // pred_check_branch
      %143 = sbr.rel (0) target = $region21
    $region20: #{tpu_custom_call.1} parent=1 // pred_region
      %145 = vsyncadd [#allocation4], 0
      %s147 = sshll.u32 [#allocation7], 4
      %s148 = int_to_ptr.vmem [resolvable:$true] %s147
      %s149 = sshll.u32 %s2, 4
      %s150 = int_to_ptr.hbm [resolvable:$true] %s149
      %152 = dma.vmem_to_hbm [thread:$0]  %s148, 32, %s150, [#allocation4]
    $region21: #{tpu_custom_call.1} parent=1 // pred_fallthru
      _
    // Predicated region
    $region22: #{tpu_custom_call.1} parent=1 // pred_check
      _
    $region23: #{tpu_custom_call.1} parent=1 // pred_check_branch
      %154 = sbr.rel (0) target = $region25
    $region24: #{tpu_custom_call.1} parent=1 // pred_region
      %156 = dma.done [#allocation4], 32
    $region25: #{tpu_custom_call.1} parent=1 // pred_fallthru
      _
    %157 = vsyncpa [#allocation3], 1
    %158 = vsyncpa [#allocation6], 1
    %159 = vsyncpa [#allocation4], 1

</llo_original>
